<compile_context>
chip_gen: v7x
topology: tpu7x:2x2x1
jax: 0.10.0
libtpu: 0.0.40
codegen_flags: <defaults>
</compile_context>

<pallas_src>
import functools

import jax
import jax.numpy as jnp
from jax.experimental import pallas as pl
from jax.experimental.pallas import tpu as pltpu

K_ALIGN = 128  # lane alignment target for matmul contraction dims


# --------------------------------------------------------------------------
# small helpers
# --------------------------------------------------------------------------

def _round_up(x, m):
    return ((x + m - 1) // m) * m


def _pick_tile(n, prefs=(512, 256, 128, 64, 32, 16, 8)):
    for t in prefs:
        if n % t == 0:
            return t
    return None


# --------------------------------------------------------------------------
# Pallas kernels
# --------------------------------------------------------------------------

def _mm_kernel(a_ref, b_ref, bias_ref, o_ref, *, act):
    acc = jnp.dot(a_ref[...], b_ref[...], preferred_element_type=jnp.float32)
    acc = acc + bias_ref[...]
    if act == "relu":
        acc = jnp.maximum(acc, 0.0)
    o_ref[...] = acc.astype(o_ref.dtype)


def matmul_bias_act(a, b, bias, act=None):
    """(M,K) @ (K,N) + bias(N,), optional ReLU.  bf16 operands, f32 accumulate.

    Rows are tiled on a parallel grid (tm preferring 512/256); K and N stay
    whole per block (K <= ~1.2k, N <= 128 at every call site).  M is padded to
    a multiple of 128 when it has no clean divisor (keeps the (8,128) rule).
    """
    M, K = a.shape
    Kb, N = b.shape
    assert K == Kb
    tm = _pick_tile(M)
    if tm is None:
        Mp = _round_up(M, 128)
        a = jnp.pad(a, ((0, Mp - M), (0, 0)))
        tm = 128
    else:
        Mp = M
    a16 = a.astype(jnp.bfloat16)
    b16 = b.astype(jnp.bfloat16)
    bias2 = bias.reshape(1, N).astype(jnp.float32)

    tile_bytes = tm * K * 2 + K * N * 2 + tm * N * 4 + N * 4
    vmem_limit = int(min(max(4 * tile_bytes, 16 * 2 ** 20), 60 * 2 ** 20))
    cost = pl.CostEstimate(
        flops=2 * Mp * N * K,
        transcendentals=0,
        bytes_accessed=int(a16.size * 2 + b16.size * 2 + Mp * N * 4))

    out = pl.pallas_call(
        functools.partial(_mm_kernel, act=act),
        out_shape=jax.ShapeDtypeStruct((Mp, N), jnp.float32),
        grid=(Mp // tm,),
        in_specs=[pl.BlockSpec((tm, K), lambda i: (i, 0)),
                  pl.BlockSpec((K, N), lambda i: (0, 0)),
                  pl.BlockSpec((1, N), lambda i: (0, 0))],
        out_specs=pl.BlockSpec((tm, N), lambda i: (i, 0)),
        compiler_params=pltpu.CompilerParams(
            dimension_semantics=("parallel",),
            vmem_limit_bytes=vmem_limit),
        cost_estimate=cost,
    )(a16, b16, bias2)
    return out if Mp == M else out[:M]


def _inorm_relu_kernel(x_ref, o_ref, *, eps):
    x = x_ref[...]                                     # (H*W, tc)
    mu = jnp.mean(x, axis=0, keepdims=True)
    var = jnp.mean(jnp.square(x - mu), axis=0, keepdims=True)
    o_ref[...] = jnp.maximum((x - mu) * jax.lax.rsqrt(var + eps), 0.0)


def instance_norm_relu(x, eps=1e-5):
    """nn.InstanceNorm2d(affine=False) + ReLU on an NHWC tensor (f32 math)."""
    B, H, W, C = x.shape
    x3 = x.reshape(B, H * W, C).astype(jnp.float32)
    tc = 128 if C % 128 == 0 else C                    # channel (lane) tiling
    out = pl.pallas_call(
        functools.partial(_inorm_relu_kernel, eps=eps),
        out_shape=jax.ShapeDtypeStruct((B, H * W, C), jnp.float32),
        grid=(B, C // tc),
        in_specs=[pl.BlockSpec((None, H * W, tc), lambda b, c: (b, 0, c))],
        out_specs=pl.BlockSpec((None, H * W, tc), lambda b, c: (b, 0, c)),
        compiler_params=pltpu.CompilerParams(
            dimension_semantics=("parallel", "parallel")),
    )(x3)
    return out.reshape(B, H, W, C)


def _masked_mean_kernel(x_ref, o_ref, *, eps):
    x = x_ref[...]                                     # (S, tp, C)
    mask = (jnp.abs(x) > 0).astype(jnp.float32)
    o_ref[...] = jnp.sum(x * mask, axis=0) / (eps + jnp.sum(mask, axis=0))


def reduce_masked_mean_cams(feat_mems, eps=1e-6):
    """reduce_masked_mean over the camera axis of (B, S, P, C) (channels-last)."""
    B, S, P, C = feat_mems.shape
    tp = _pick_tile(P) or P
    x = feat_mems.astype(jnp.float32)
    return pl.pallas_call(
        functools.partial(_masked_mean_kernel, eps=eps),
        out_shape=jax.ShapeDtypeStruct((B, P, C), jnp.float32),
        grid=(B, P // tp),
        in_specs=[pl.BlockSpec((None, S, tp, C), lambda b, p: (b, 0, p, 0))],
        out_specs=pl.BlockSpec((None, tp, C), lambda b, p: (b, p, 0)),
        compiler_params=pltpu.CompilerParams(
            dimension_semantics=("parallel", "parallel")),
    )(x)


def _warp_gather_kernel(idx_ref, wgt_ref, feat_ref, o_ref, gbuf, *, tp):
    # idx_ref : SMEM (BS*4, P) int32 flat corner indices (scalar prefetch)
    # wgt_ref : VMEM (tp, 4) f32 corner weights (0 where corner invalid)
    # feat_ref: VMEM (Q, C)  per-camera feature slab (Q = Hf*Wf)
    # o_ref   : VMEM (tp, C) BEV output tile
    # gbuf    : VMEM scratch (4, tp, C)
    b = pl.program_id(0)
    base = pl.program_id(1) * tp

    def gather_row(p, carry):
        row = base + p
        for c in range(4):
            src = idx_ref[b * 4 + c, row]
            gbuf[c, pl.ds(p, 1), :] = feat_ref[pl.ds(src, 1), :]
        return carry

    jax.lax.fori_loop(0, tp, gather_row, 0)

    w = wgt_ref[...]                                   # (tp, 4)
    acc = w[:, 0:1] * gbuf[0]
    for c in range(1, 4):
        acc = acc + w[:, c:c + 1] * gbuf[c]
    o_ref[...] = acc


def warp_gather(feat_flat, idx, wgt):
    """Bilinear homography warp as a gather (replaces the dense one-hot matmul).

    feat_flat : (BS, Q, C) per-camera feature slab, channels-last
    idx       : (BS, 4, P) int32 flat corner indices
    wgt       : (BS, P, 4) f32 corner weights
    returns   : (BS, P, C) f32 warped BEV features per camera
    """
    BS, Q, C = feat_flat.shape
    _, P, _ = wgt.shape
    tp = _pick_tile(P) or P
    idx2 = idx.reshape(BS * 4, P).astype(jnp.int32)    # long axis last for SMEM

    tile_bytes = Q * C * 4 + tp * 4 * 4 + 2 * tp * C * 4 + 4 * tp * C * 4
    vmem_limit = int(min(max(4 * tile_bytes, 16 * 2 ** 20), 60 * 2 ** 20))
    cost = pl.CostEstimate(
        flops=8 * BS * P * C,
        transcendentals=0,
        bytes_accessed=int(feat_flat.size * 4 + wgt.size * 4
                           + idx2.size * 4 + BS * P * C * 4))

    return pl.pallas_call(
        functools.partial(_warp_gather_kernel, tp=tp),
        out_shape=jax.ShapeDtypeStruct((BS, P, C), jnp.float32),
        grid_spec=pltpu.PrefetchScalarGridSpec(
            num_scalar_prefetch=1,
            grid=(BS, P // tp),
            in_specs=[pl.BlockSpec((None, tp, 4), lambda b, p, idx_r: (b, p, 0)),
                      pl.BlockSpec((None, Q, C), lambda b, p, idx_r: (b, 0, 0))],
            out_specs=pl.BlockSpec((None, tp, C), lambda b, p, idx_r: (b, p, 0)),
            scratch_shapes=[pltpu.VMEM((4, tp, C), jnp.float32)]),
        compiler_params=pltpu.CompilerParams(
            dimension_semantics=("parallel", "parallel"),
            vmem_limit_bytes=vmem_limit),
        cost_estimate=cost,
    )(idx2, wgt.astype(jnp.float32), feat_flat.astype(jnp.float32))


# --------------------------------------------------------------------------
# Glue: conv-as-matmul (NHWC), fused heads, geometry, warp tables
# --------------------------------------------------------------------------

def conv2d(x, w, b, stride=1, pad=0, act=None):
    """Conv on NHWC input; weight in torch (Cout, Cin, kh, kw) layout."""
    N, H, W, Cin = x.shape
    Cout, _, kh, kw = w.shape
    if kh == 1 and kw == 1 and stride == 1 and pad == 0:
        a = x.reshape(N * H * W, Cin)
        out = matmul_bias_act(a, w.reshape(Cout, Cin).T, b, act=act)
        return out.reshape(N, H, W, Cout)
    xp = jnp.pad(x, ((0, 0), (pad, pad), (pad, pad), (0, 0)))
    Ho = (H + 2 * pad - kh) // stride + 1
    Wo = (W + 2 * pad - kw) // stride + 1
    cols = [xp[:, dy:dy + stride * Ho:stride, dx:dx + stride * Wo:stride, :]
            for dy in range(kh) for dx in range(kw)]
    K = Cin * kh * kw
    Kp = _round_up(K, K_ALIGN)
    if Kp > K:  # lane-align K inside the same concatenate (no extra pass)
        cols.append(jnp.zeros((N, Ho, Wo, Kp - K), x.dtype))
    patches = jnp.concatenate(cols, axis=-1).reshape(N * Ho * Wo, Kp)
    wmat = w.transpose(2, 3, 1, 0).reshape(K, Cout)     # (dy, dx, cin) ordering
    if Kp > K:
        wmat = jnp.concatenate([wmat, jnp.zeros((Kp - K, Cout), wmat.dtype)], 0)
    out = matmul_bias_act(patches, wmat, b, act=act)
    return out.reshape(N, Ho, Wo, Cout)


def fused_heads_1x1(x, head_params, pad_to=128):
    """Run several 1x1-conv heads as ONE lane-dense matmul; slice outputs."""
    N, H, W, Cin = x.shape
    w_cat = jnp.concatenate([w.reshape(w.shape[0], Cin) for w, _ in head_params], 0)
    b_cat = jnp.concatenate([b for _, b in head_params], 0)
    Ntot = w_cat.shape[0]
    Np = _round_up(Ntot, pad_to)
    w_cat = jnp.pad(w_cat, ((0, Np - Ntot), (0, 0)))
    b_cat = jnp.pad(b_cat, ((0, Np - Ntot),))
    out = matmul_bias_act(x.reshape(N * H * W, Cin), w_cat.T, b_cat)    # (M, Np)
    outs, off = [], 0
    for w, _ in head_params:
        c = w.shape[0]
        outs.append(out[:, off:off + c].reshape(N, H, W, c))
        off += c
    return outs


def scale_intrinsics(pix_T_cams, sx, sy):
    scale = jnp.array([sx, sy, 1.0, 1.0], dtype=pix_T_cams.dtype).reshape(1, 4, 1)
    return pix_T_cams * scale


def bilinear_warp_tables(proj_mats, Hf, Wf, Yd, Xd):
    """Corner indices + weights for kornia-style warp_perspective (align_corners=False)."""
    inv_m = jnp.linalg.inv(proj_mats)                   # featpix_T_mem
    xs = jnp.arange(Xd, dtype=jnp.float32)
    ys = jnp.arange(Yd, dtype=jnp.float32)
    gy, gx = jnp.meshgrid(ys, xs, indexing="ij")
    dst = jnp.stack([gx.reshape(-1), gy.reshape(-1),
                     jnp.ones(Yd * Xd, jnp.float32)], axis=-1)           # (P, 3)
    src = jnp.einsum("bij,pj->bpi", inv_m, dst)                          # (BS, P, 3)
    wc = src[..., 2]
    inv_w = jnp.where(jnp.abs(wc) > 1e-8, 1.0 / wc, 1.0)
    u = src[..., 0] * inv_w
    v = src[..., 1] * inv_w
    # TODO(synk): verify the half-pixel remap numerically against kornia.
    u = u * (Wf / max(Wf - 1, 1)) - 0.5
    v = v * (Hf / max(Hf - 1, 1)) - 0.5
    x0 = jnp.floor(u)
    y0 = jnp.floor(v)
    x1, y1 = x0 + 1.0, y0 + 1.0
    wx1 = u - x0
    wx0 = 1.0 - wx1
    wy1 = v - y0
    wy0 = 1.0 - wy1

    def corner(xc, yc, wgt):
        valid = (xc >= 0) & (xc <= Wf - 1) & (yc >= 0) & (yc <= Hf - 1)
        idx = jnp.clip(yc.astype(jnp.int32) * Wf + xc.astype(jnp.int32),
                       0, Hf * Wf - 1)
        return idx, jnp.where(valid, wgt, 0.0)

    i00, w00 = corner(x0, y0, wx0 * wy0)
    i10, w10 = corner(x1, y0, wx1 * wy0)
    i01, w01 = corner(x0, y1, wx0 * wy1)
    i11, w11 = corner(x1, y1, wx1 * wy1)
    idx = jnp.stack([i00, i10, i01, i11], axis=1).astype(jnp.int32)      # (BS,4,P)
    wgt = jnp.stack([w00, w10, w01, w11], axis=-1).astype(jnp.float32)   # (BS,P,4)
    return idx, wgt


# --------------------------------------------------------------------------
# MVDet module (JAX / Pallas)
# --------------------------------------------------------------------------

def _conv_params(key, cout, cin, kh, kw, scale=0.1):
    kw_, kb_ = jax.random.split(key)
    w = scale * jax.random.normal(kw_, (cout, cin, kh, kw), jnp.float32)
    b = scale * jax.random.normal(kb_, (cout,), jnp.float32)
    return w, b


class MVDetPallas:
    def __init__(self, Y, Z, X, num_cameras=None, num_classes=1,
                 latent_dim=64, feat2d_dim=32, key=jax.random.PRNGKey(42)):
        self.Y, self.Z, self.X = Y, Z, X
        self.num_cameras = num_cameras
        self.latent_dim = latent_dim
        self.feat2d_dim = feat2d_dim
        self.num_classes = num_classes
        self.mean = jnp.array([0.485, 0.456, 0.406], jnp.float32)
        self.std = jnp.array([0.229, 0.224, 0.225], jnp.float32)
        # loss-weight scalars (unused in forward, kept for parity with __init__)
        self.center_weight = jnp.float32(0.0)
        self.offset_weight = jnp.float32(0.0)
        self.tracking_weight = jnp.float32(0.0)
        self.size_weight = jnp.float32(0.0)
        self.rot_weight = jnp.float32(0.0)
        # scene bounds for the vox_util stand-in
        self.XMIN, self.XMAX = -8.0, 8.0
        self.YMIN, self.YMAX = -8.0, 8.0
        self.ZMIN, self.ZMAX = 0.0, 2.0

        keys = jax.random.split(key, 16)
        # TODO(synk): ResNet-18 encoder backbone replaced by a 2-layer stride-2
        # conv stand-in (same feat2d_dim output channels).
        self.enc_w1, self.enc_b1 = _conv_params(keys[0], 32, 3, 3, 3)
        # Fold ImageNet whitening (x - mean)/std into the first conv.
        inv_std = (1.0 / self.std).reshape(1, 3, 1, 1)
        self.enc_w1f = self.enc_w1 * inv_std
        self.enc_b1f = self.enc_b1 - jnp.einsum(
            "ochw,c->o", self.enc_w1, self.mean / self.std)
        self.enc_w2, self.enc_b2 = _conv_params(keys[1], feat2d_dim, 32, 3, 3)
        if num_cameras is not None:
            self.cc_w1, self.cc_b1 = _conv_params(
                keys[2], latent_dim, feat2d_dim * num_cameras, 3, 3)
            self.cc_w2, self.cc_b2 = _conv_params(keys[3], latent_dim, latent_dim, 1, 1)
        self.tb_w1, self.tb_b1 = _conv_params(keys[4], latent_dim, latent_dim * 2, 3, 3)
        self.tb_w2, self.tb_b2 = _conv_params(keys[5], latent_dim, latent_dim, 1, 1)
        # TODO(synk): original TrackTacular Decoder (UNet-style upsampler + named
        # heads) not available; stand-in = conv trunk + fused 1x1-conv heads.
        self.dec_w, self.dec_b = _conv_params(keys[6], latent_dim, latent_dim, 3, 3)
        self.hc_w, self.hc_b = _conv_params(keys[7], num_classes, latent_dim, 1, 1)
        self.ho_w, self.ho_b = _conv_params(keys[8], 2, latent_dim, 1, 1)
        self.hs_w, self.hs_b = _conv_params(keys[9], 3, latent_dim, 1, 1)
        self.hr_w, self.hr_b = _conv_params(keys[10], 2, latent_dim, 1, 1)
        self.ht_w, self.ht_b = _conv_params(keys[11], 2, latent_dim, 1, 1)
        self.ic_w, self.ic_b = _conv_params(keys[12], 1, feat2d_dim, 1, 1)
        self.io_w, self.io_b = _conv_params(keys[13], 2, feat2d_dim, 1, 1)

    def get_ref_T_mem(self, B, Y, Z, X):
        # TODO(synk): vox_util.get_ref_T_mem stand-in (linear voxel->metric map).
        vx = (self.XMAX - self.XMIN) / X
        vy = (self.YMAX - self.YMIN) / Y
        vz = (self.ZMAX - self.ZMIN) / Z
        m = jnp.array([[vx, 0.0, 0.0, self.XMIN + 0.5 * vx],
                       [0.0, vy, 0.0, self.YMIN + 0.5 * vy],
                       [0.0, 0.0, vz, self.ZMIN + 0.5 * vz],
                       [0.0, 0.0, 0.0, 1.0]], jnp.float32)
        return jnp.tile(m[None], (B, 1, 1))

    def forward(self, rgb_cams, pix_T_cams, cams_T_global, ref_T_global, prev_bev=None):
        B, S, C, H, W = rgb_cams.shape
        __p = lambda x: x.reshape((B * S,) + x.shape[2:])       # pack_seqdim
        rgb_cams_ = __p(rgb_cams)
        pix_T_cams_ = __p(pix_T_cams)
        cams_T_global_ = __p(cams_T_global)
        global_T_cams_ = jnp.linalg.inv(cams_T_global_)
        ref_T_cams_ = jnp.matmul(jnp.tile(ref_T_global, (S, 1, 1)), global_T_cams_)
        cams_T_ref_ = jnp.linalg.inv(ref_T_cams_)

        # NCHW -> NHWC once; ImageNet whitening is folded into enc_w1f/enc_b1f.
        x = rgb_cams_.astype(jnp.float32).transpose(0, 2, 3, 1)          # (BS,H,W,3)

        # encoder stand-in (Pallas conv-as-matmul kernels, bf16 MXU feed)
        h1 = conv2d(x, self.enc_w1f, self.enc_b1f, stride=2, pad=1, act="relu")
        feat_cams_ = conv2d(h1, self.enc_w2, self.enc_b2, stride=2, pad=1, act="relu")
        BS, Hf, Wf, Cf = feat_cams_.shape

        sy = Hf / float(H)
        sx = Wf / float(W)
        featpix_T_cams_ = scale_intrinsics(pix_T_cams_, sx, sy)
        cols = jnp.array([0, 1, 3])
        featpix_T_ref_ = jnp.matmul(featpix_T_cams_[:, :3, :3],
                                    cams_T_ref_[:, :3, :][:, :, cols])
        ref_T_mem = self.get_ref_T_mem(B, self.Y, self.Z, self.X)
        ref_T_mem3 = ref_T_mem[0][cols][:, cols]
        featpix_T_mem_ = jnp.matmul(featpix_T_ref_, ref_T_mem3)
        proj_mats = jnp.linalg.inv(featpix_T_mem_)                       # mem_T_featpix

        # homography warp of camera features into BEV (Pallas gather kernel)
        idx, wgt = bilinear_warp_tables(proj_mats, Hf, Wf, self.Y, self.X)
        feat_flat = feat_cams_.reshape(BS, Hf * Wf, Cf)                  # channels-last
        feat_mems_ = warp_gather(feat_flat, idx, wgt)                    # (BS, P, Cf)
        feat_mems = feat_mems_.reshape(B, S, self.Y * self.X, Cf)

        if self.num_cameras is None:
            feat_mem = reduce_masked_mean_cams(feat_mems).reshape(
                B, self.Y, self.X, Cf)
        else:
            xcams = feat_mems.transpose(0, 2, 1, 3).reshape(
                B, self.Y, self.X, S * Cf)                               # (s, c) channel order
            h = conv2d(xcams, self.cc_w1, self.cc_b1, stride=1, pad=1)
            h = instance_norm_relu(h)
            feat_mem = conv2d(h, self.cc_w2, self.cc_b2)

        if prev_bev is None:
            prev_bev = feat_mem
        else:
            prev_bev = prev_bev.transpose(0, 2, 3, 1)                    # NCHW -> NHWC
        bev = jnp.concatenate([feat_mem, prev_bev], axis=-1)
        t = conv2d(bev, self.tb_w1, self.tb_b1, stride=1, pad=1)
        t = instance_norm_relu(t)
        bev_features = conv2d(t, self.tb_w2, self.tb_b2)

        # decoder stand-in: conv trunk + fused lane-dense 1x1 heads
        d = conv2d(bev_features, self.dec_w, self.dec_b, stride=1, pad=1)
        d = instance_norm_relu(d)
        hc, ho, hs, hr, ht = fused_heads_1x1(
            d, [(self.hc_w, self.hc_b), (self.ho_w, self.ho_b),
                (self.hs_w, self.hs_b), (self.hr_w, self.hr_b),
                (self.ht_w, self.ht_b)])
        ic, io = fused_heads_1x1(
            feat_cams_, [(self.ic_w, self.ic_b), (self.io_w, self.io_b)])

        nchw = lambda z: z.transpose(0, 3, 1, 2)
        out_dict = {
            "instance_center": nchw(hc),
            "instance_offset": nchw(ho),
            "instance_size": nchw(hs),
            "instance_rot": nchw(hr),
            "instance_tracking": nchw(ht),
            "img_center": nchw(ic),
            "img_offset": nchw(io),
        }
        return out_dict


# --------------------------------------------------------------------------
# Main
# --------------------------------------------------------------------------

if __name__ == "__main__":
    key = jax.random.PRNGKey(0)
    B, S, C, H, W = 1, 2, 3, 32, 32
    Y, Z, X = 16, 4, 16

    k1, k2 = jax.random.split(key)
    rgb_cams = jax.random.uniform(k1, (B, S, C, H, W), jnp.float32)

    fx = fy = 32.0
    cx, cy = W / 2.0, H / 2.0
    Kmat = jnp.array([[fx, 0, cx, 0],
                      [0, fy, cy, 0],
                      [0, 0, 1, 0],
                      [0, 0, 0, 1]], jnp.float32)
    pix_T_cams = jnp.tile(Kmat[None, None], (B, S, 1, 1))

    def cam_pose(angle_deg, tx):
        a = jnp.deg2rad(jnp.float32(angle_deg))
        ca, sa = jnp.cos(a), jnp.sin(a)
        return jnp.array([[1.0, 0.0, 0.0, tx],
                          [0.0, ca, -sa, 0.0],
                          [0.0, sa, ca, -5.0],
                          [0.0, 0.0, 0.0, 1.0]], jnp.float32)

    cams_T_global = jnp.stack([cam_pose(30.0, 1.0), cam_pose(45.0, -1.0)], axis=0)[None]
    ref_T_global = jnp.tile(jnp.eye(4, dtype=jnp.float32)[None], (B, 1, 1))

    model = MVDetPallas(Y, Z, X, num_cameras=S, num_classes=1,
                        latent_dim=64, feat2d_dim=32, key=jax.random.PRNGKey(42))
    out = model.forward(rgb_cams, pix_T_cams, cams_T_global, ref_T_global, prev_bev=None)
    out = jax.block_until_ready(out)

    assert out["instance_center"].shape == (B, 1, Y, X)
    assert out["instance_offset"].shape == (B, 2, Y, X)
    assert out["instance_size"].shape == (B, 3, Y, X)
    assert out["img_center"].shape == (B * S, 1, 8, 8)
    assert out["img_offset"].shape == (B * S, 2, 8, 8)

    # exercise the masked camera-mean kernel (used when num_cameras is None)
    mm = reduce_masked_mean_cams(
        jax.random.uniform(k2, (B, S, Y * X, 32), jnp.float32))
    mm = jax.block_until_ready(mm)
    assert mm.shape == (B, Y * X, 32)

    print("KERNEL_OK")
</pallas_src>

<mosaic_0001>
module attributes {stable_mosaic.version = 11 : i64} {
  func.func @_mm_kernel(%arg0: i32, %arg1: memref<512x128xbf16, #tpu.memory_space<vmem>>, %arg2: memref<128x32xbf16, #tpu.memory_space<vmem>>, %arg3: memref<1x32xf32, #tpu.memory_space<vmem>>, %arg4: memref<512x32xf32, #tpu.memory_space<vmem>>) attributes {dimension_semantics = [#tpu.dimension_semantics<parallel>], iteration_bounds = array<i64: 1>, scalar_prefetch = 0 : i64, scratch_operands = 0 : i64, tpu.core_type = #tpu.core_type<tc>, window_params = [{transform_indices = @transform_0, window_bounds = array<i64: 512, 128>}, {pipeline_mode = #tpu.pipeline_mode<synchronous>, transform_indices = @transform_1, window_bounds = array<i64: 128, 32>}, {pipeline_mode = #tpu.pipeline_mode<synchronous>, transform_indices = @transform_2, window_bounds = array<i64: 1, 32>}, {transform_indices = @transform_3, window_bounds = array<i64: 512, 32>}]} {
    %c0 = arith.constant 0 : index
    %c0_0 = arith.constant 0 : index
    %0 = vector.load %arg1[%c0, %c0_0] : memref<512x128xbf16, #tpu.memory_space<vmem>>, vector<512x128xbf16>
    %c0_1 = arith.constant 0 : index
    %c0_2 = arith.constant 0 : index
    %1 = vector.load %arg2[%c0_1, %c0_2] : memref<128x32xbf16, #tpu.memory_space<vmem>>, vector<128x32xbf16>
    %cst = arith.constant dense<0.000000e+00> : vector<512x32xf32>
    %2 = tpu.matmul %0, %1, %cst {dimension_numbers = #tpu.dot_dimension_numbers<[1], [0], [0], [1], [0, 0, 1, 1], [], []>} : vector<512x128xbf16>, vector<128x32xbf16>, vector<512x32xf32> -> vector<512x32xf32>
    %c0_3 = arith.constant 0 : index
    %c0_4 = arith.constant 0 : index
    %3 = vector.load %arg3[%c0_3, %c0_4] : memref<1x32xf32, #tpu.memory_space<vmem>>, vector<1x32xf32>
    %4 = vector.broadcast %3 : vector<1x32xf32> to vector<512x32xf32>
    %5 = arith.addf %2, %4 : vector<512x32xf32>
    %cst_5 = arith.constant 0.000000e+00 : f32
    %6 = vector.broadcast %cst_5 : f32 to vector<512x32xf32>
    %7 = arith.maximumf %5, %6 : vector<512x32xf32>
    %c0_6 = arith.constant 0 : index
    %c0_7 = arith.constant 0 : index
    %8 = vector.load %arg4[%c0_6, %c0_7] : memref<512x32xf32, #tpu.memory_space<vmem>>, vector<512x32xf32>
    tpu.vector_store %arg4[%c0_6, %c0_7], %7 {strides = array<i32>} : memref<512x32xf32, #tpu.memory_space<vmem>>, vector<512x32xf32>,
    return
  }
  func.func @transform_0(%arg0: i32) -> (i32, i32) {
    %c0_i32 = arith.constant 0 : i32
    %c0_i32_0 = arith.constant 0 : i32
    return %arg0, %c0_i32 : i32, i32
  }
  func.func @transform_1(%arg0: i32) -> (i32, i32) {
    %c0_i32 = arith.constant 0 : i32
    %c0_i32_0 = arith.constant 0 : i32
    %c0_i32_1 = arith.constant 0 : i32
    return %c0_i32, %c0_i32_0 : i32, i32
  }
  func.func @transform_2(%arg0: i32) -> (i32, i32) {
    %c0_i32 = arith.constant 0 : i32
    %c0_i32_0 = arith.constant 0 : i32
    %c0_i32_1 = arith.constant 0 : i32
    return %c0_i32, %c0_i32_0 : i32, i32
  }
  func.func @transform_3(%arg0: i32) -> (i32, i32) {
    %c0_i32 = arith.constant 0 : i32
    %c0_i32_0 = arith.constant 0 : i32
    return %arg0, %c0_i32 : i32, i32
  }
}

</mosaic_0001>

<llo_original>
// kernel: tpu_custom_call.1
$region0: #{tpu_custom_call.1}
  #allocation0 [shape = 'u32[]', space=smem, size = 0x4, offset = 0x4, fixed_abs, tag = 'smem constant byte address 0x4 - core index']
  #allocation1 [shape = 'u32[144,128]{1,0:T(1,128)}', space=vmem, size = 0x12000, scoped, tag = 'internal scratch']
  %s0 = inlined_call_operand.hbm [shape: bf16[512,128], index: 0, kind: input, shape index: {}]
  %s1 = inlined_call_operand.vmem [shape: bf16[128,32], index: 1, kind: input, shape index: {}]
  %s2 = inlined_call_operand.vmem [shape: f32[1,32], index: 2, kind: input, shape index: {}]
  %s3 = inlined_call_operand.vmem [shape: f32[512,32], index: 3, kind: output, shape index: {}]
  %s4 = sld [smem:[#allocation0]]
  $region26: #{tpu_custom_call.1} parent=0
    _
  %s6 = ssub.s32 1, %s4
  %s7 = scalar_select 0, %s6, %s4
  $region1: #{tpu_custom_call.1} parent=0
    #allocation2 [shape = 'u8[131072]{0}', space=vmem, size = 0x20000, scoped, tag = 'input window, operand 0, single buffered']
    #allocation3 [shape = 's32[1]{0}', space=sflag, size = 0x4, scoped, tag = 'scoped memory for tpu_custom_call.1']
    %8 = vsyncpa [#allocation3], 0
    // Predicated region
    $region2: #{tpu_custom_call.1} parent=1 // pred_check
      _
    $region3: #{tpu_custom_call.1} parent=1 // pred_check_branch
      %10 = sbr.rel (0) target = $region5
    $region4: #{tpu_custom_call.1} parent=1 // pred_region
      %s12 = ssub.s32 4096, 4096
      %13 = vsyncadd [#allocation3], %s12
      %s14 = sshll.u32 [#allocation2], 4
      %s15 = int_to_ptr.vmem [resolvable:$true] %s14
      %20 = dma.hbm_to_vmem [thread:$0]  %s0, 4096, %s15, [#allocation3], 64, 64, 4
    $region5: #{tpu_custom_call.1} parent=1 // pred_fallthru
      _
    // Predicated region
    $region6: #{tpu_custom_call.1} parent=1 // pred_check
      _
    $region7: #{tpu_custom_call.1} parent=1 // pred_check_branch
      %22 = sbr.rel (0) target = $region9
    $region8: #{tpu_custom_call.1} parent=1 // pred_region
      _
    $region9: #{tpu_custom_call.1} parent=1 // pred_fallthru
      _
    // Predicated region
    $region10: #{tpu_custom_call.1} parent=1 // pred_check
      _
    $region11: #{tpu_custom_call.1} parent=1 // pred_check_branch
      %24 = sbr.rel (0) target = $region13
    $region12: #{tpu_custom_call.1} parent=1 // pred_region
      _
    $region13: #{tpu_custom_call.1} parent=1 // pred_fallthru
      _
    // Predicated region
    $region14: #{tpu_custom_call.1} parent=1 // pred_check
      _
    $region15: #{tpu_custom_call.1} parent=1 // pred_check_branch
      %26 = sbr.rel (0) target = $region17
    $region16: #{tpu_custom_call.1} parent=1 // pred_region
      %27 = dma.done [#allocation3], 4096
    $region17: #{tpu_custom_call.1} parent=1 // pred_fallthru
      _
    %v29 = vld [vmem:[#allocation2] sm:$0xf]
    %v30 = vld [vmem:[#allocation2 + $0x4] sm:$0xf]
    %v31 = vld [vmem:[#allocation2 + $0x8] sm:$0xf]
    %v32 = vld [vmem:[#allocation2 + $0xc] sm:$0xf]
    %v33 = vld [vmem:[#allocation2 + $0x10] sm:$0xf]
    %v34 = vld [vmem:[#allocation2 + $0x14] sm:$0xf]
    %v35 = vld [vmem:[#allocation2 + $0x18] sm:$0xf]
    %v36 = vld [vmem:[#allocation2 + $0x1c] sm:$0xf]
    %v37 = vld [vmem:[#allocation2 + $0x20] sm:$0xf]
    %v38 = vld [vmem:[#allocation2 + $0x24] sm:$0xf]
    %v39 = vld [vmem:[#allocation2 + $0x28] sm:$0xf]
    %v40 = vld [vmem:[#allocation2 + $0x2c] sm:$0xf]
    %v41 = vld [vmem:[#allocation2 + $0x30] sm:$0xf]
    %v42 = vld [vmem:[#allocation2 + $0x34] sm:$0xf]
    %v43 = vld [vmem:[#allocation2 + $0x38] sm:$0xf]
    %v44 = vld [vmem:[#allocation2 + $0x3c] sm:$0xf]
    %v45 = vld [vmem:[#allocation2 + $0x40] sm:$0xf]
    %v46 = vld [vmem:[#allocation2 + $0x44] sm:$0xf]
    %v47 = vld [vmem:[#allocation2 + $0x48] sm:$0xf]
    %v48 = vld [vmem:[#allocation2 + $0x4c] sm:$0xf]
    %v49 = vld [vmem:[#allocation2 + $0x50] sm:$0xf]
    %v50 = vld [vmem:[#allocation2 + $0x54] sm:$0xf]
    %v51 = vld [vmem:[#allocation2 + $0x58] sm:$0xf]
    %v52 = vld [vmem:[#allocation2 + $0x5c] sm:$0xf]
    %v53 = vld [vmem:[#allocation2 + $0x60] sm:$0xf]
    %v54 = vld [vmem:[#allocation2 + $0x64] sm:$0xf]
    %v55 = vld [vmem:[#allocation2 + $0x68] sm:$0xf]
    %v56 = vld [vmem:[#allocation2 + $0x6c] sm:$0xf]
    %v57 = vld [vmem:[#allocation2 + $0x70] sm:$0xf]
    %v58 = vld [vmem:[#allocation2 + $0x74] sm:$0xf]
    %v59 = vld [vmem:[#allocation2 + $0x78] sm:$0xf]
    %v60 = vld [vmem:[#allocation2 + $0x7c] sm:$0xf]
    %v61 = vld [vmem:[#allocation2 + $0x80] sm:$0xf]
    %v62 = vld [vmem:[#allocation2 + $0x84] sm:$0xf]
    %v63 = vld [vmem:[#allocation2 + $0x88] sm:$0xf]
    %v64 = vld [vmem:[#allocation2 + $0x8c] sm:$0xf]
    %v65 = vld [vmem:[#allocation2 + $0x90] sm:$0xf]
    %v66 = vld [vmem:[#allocation2 + $0x94] sm:$0xf]
    %v67 = vld [vmem:[#allocation2 + $0x98] sm:$0xf]
    %v68 = vld [vmem:[#allocation2 + $0x9c] sm:$0xf]
    %v69 = vld [vmem:[#allocation2 + $0xa0] sm:$0xf]
    %v70 = vld [vmem:[#allocation2 + $0xa4] sm:$0xf]
    %v71 = vld [vmem:[#allocation2 + $0xa8] sm:$0xf]
    %v72 = vld [vmem:[#allocation2 + $0xac] sm:$0xf]
    %v73 = vld [vmem:[#allocation2 + $0xb0] sm:$0xf]
    %v74 = vld [vmem:[#allocation2 + $0xb4] sm:$0xf]
    %v75 = vld [vmem:[#allocation2 + $0xb8] sm:$0xf]
    %v76 = vld [vmem:[#allocation2 + $0xbc] sm:$0xf]
    %v77 = vld [vmem:[#allocation2 + $0xc0] sm:$0xf]
    %v78 = vld [vmem:[#allocation2 + $0xc4] sm:$0xf]
    %v79 = vld [vmem:[#allocation2 + $0xc8] sm:$0xf]
    %v80 = vld [vmem:[#allocation2 + $0xcc] sm:$0xf]
    %v81 = vld [vmem:[#allocation2 + $0xd0] sm:$0xf]
    %v82 = vld [vmem:[#allocation2 + $0xd4] sm:$0xf]
    %v83 = vld [vmem:[#allocation2 + $0xd8] sm:$0xf]
    %v84 = vld [vmem:[#allocation2 + $0xdc] sm:$0xf]
    %v85 = vld [vmem:[#allocation2 + $0xe0] sm:$0xf]
    %v86 = vld [vmem:[#allocation2 + $0xe4] sm:$0xf]
    %v87 = vld [vmem:[#allocation2 + $0xe8] sm:$0xf]
    %v88 = vld [vmem:[#allocation2 + $0xec] sm:$0xf]
    %v89 = vld [vmem:[#allocation2 + $0xf0] sm:$0xf]
    %v90 = vld [vmem:[#allocation2 + $0xf4] sm:$0xf]
    %v91 = vld [vmem:[#allocation2 + $0xf8] sm:$0xf]
    %v92 = vld [vmem:[#allocation2 + $0xfc] sm:$0xf]
    %v93 = vld [vmem:[%s1] sm:$0xf]
    %v94 = vld [vmem:[%s1 + $0x4] sm:$0xf]
    %v95 = vld [vmem:[%s1 + $0x8] sm:$0xf]
    %v96 = vld [vmem:[%s1 + $0xc] sm:$0xf]
    %v97 = vld [vmem:[%s1 + $0x10] sm:$0xf]
    %v98 = vld [vmem:[%s1 + $0x14] sm:$0xf]
    %v99 = vld [vmem:[%s1 + $0x18] sm:$0xf]
    %v100 = vld [vmem:[%s1 + $0x1c] sm:$0xf]
    %v101 = vld [vmem:[%s1 + $0x20] sm:$0xf]
    %v102 = vld [vmem:[%s1 + $0x24] sm:$0xf]
    %v103 = vld [vmem:[%s1 + $0x28] sm:$0xf]
    %v104 = vld [vmem:[%s1 + $0x2c] sm:$0xf]
    %v105 = vld [vmem:[%s1 + $0x30] sm:$0xf]
    %v106 = vld [vmem:[%s1 + $0x34] sm:$0xf]
    %v107 = vld [vmem:[%s1 + $0x38] sm:$0xf]
    %v108 = vld [vmem:[%s1 + $0x3c] sm:$0xf]
    %v109 = vld [vmem:[%s2] sm:$0x1]
    %v111 = vlaneseq
    %v112 = vshrl.u32 %v111, 7
    %v113 = vsub.s32 0, %v112
    %v114 = vrot.slane %v109, %v113
    %v180 = vunpack.c.l.b16 %v29
    %v181 = vunpack.c.l.b16 %v30
    %v182 = vunpack.c.l.b16 %v31
    %v183 = vunpack.c.l.b16 %v32
    %v184 = vunpack.c.l.b16 %v33
    %v185 = vunpack.c.l.b16 %v34
    %v186 = vunpack.c.l.b16 %v35
    %v187 = vunpack.c.l.b16 %v36
    %v188 = vunpack.c.l.b16 %v37
    %v189 = vunpack.c.l.b16 %v38
    %v190 = vunpack.c.l.b16 %v39
    %v191 = vunpack.c.l.b16 %v40
    %v192 = vunpack.c.l.b16 %v41
    %v193 = vunpack.c.l.b16 %v42
    %v194 = vunpack.c.l.b16 %v43
    %v195 = vunpack.c.l.b16 %v44
    %v196 = vunpack.c.l.b16 %v45
    %v197 = vunpack.c.l.b16 %v46
    %v198 = vunpack.c.l.b16 %v47
    %v199 = vunpack.c.l.b16 %v48
    %v200 = vunpack.c.l.b16 %v49
    %v201 = vunpack.c.l.b16 %v50
    %v202 = vunpack.c.l.b16 %v51
    %v203 = vunpack.c.l.b16 %v52
    %v204 = vunpack.c.l.b16 %v53
    %v205 = vunpack.c.l.b16 %v54
    %v206 = vunpack.c.l.b16 %v55
    %v207 = vunpack.c.l.b16 %v56
    %v208 = vunpack.c.l.b16 %v57
    %v209 = vunpack.c.l.b16 %v58
    %v210 = vunpack.c.l.b16 %v59
    %v211 = vunpack.c.l.b16 %v60
    %v212 = vunpack.c.l.b16 %v61
    %v213 = vunpack.c.l.b16 %v62
    %v214 = vunpack.c.l.b16 %v63
    %v215 = vunpack.c.l.b16 %v64
    %v216 = vunpack.c.l.b16 %v65
    %v217 = vunpack.c.l.b16 %v66
    %v218 = vunpack.c.l.b16 %v67
    %v219 = vunpack.c.l.b16 %v68
    %v220 = vunpack.c.l.b16 %v69
    %v221 = vunpack.c.l.b16 %v70
    %v222 = vunpack.c.l.b16 %v71
    %v223 = vunpack.c.l.b16 %v72
    %v224 = vunpack.c.l.b16 %v73
    %v225 = vunpack.c.l.b16 %v74
    %v226 = vunpack.c.l.b16 %v75
    %v227 = vunpack.c.l.b16 %v76
    %v228 = vunpack.c.l.b16 %v77
    %v229 = vunpack.c.l.b16 %v78
    %v230 = vunpack.c.l.b16 %v79
    %v231 = vunpack.c.l.b16 %v80
    %v232 = vunpack.c.l.b16 %v81
    %v233 = vunpack.c.l.b16 %v82
    %v234 = vunpack.c.l.b16 %v83
    %v235 = vunpack.c.l.b16 %v84
    %v236 = vunpack.c.l.b16 %v85
    %v237 = vunpack.c.l.b16 %v86
    %v238 = vunpack.c.l.b16 %v87
    %v239 = vunpack.c.l.b16 %v88
    %v240 = vunpack.c.l.b16 %v89
    %v241 = vunpack.c.l.b16 %v90
    %v242 = vunpack.c.l.b16 %v91
    %v243 = vunpack.c.l.b16 %v92
    %v244 = vpack.c.b16 %v181, %v180
    %v245 = vpack.c.b16 %v183, %v182
    %v246 = vpack.c.b16 %v185, %v184
    %v247 = vpack.c.b16 %v187, %v186
    %v248 = vpack.c.b16 %v189, %v188
    %v249 = vpack.c.b16 %v191, %v190
    %v250 = vpack.c.b16 %v193, %v192
    %v251 = vpack.c.b16 %v195, %v194
    %v252 = vpack.c.b16 %v197, %v196
    %v253 = vpack.c.b16 %v199, %v198
    %v254 = vpack.c.b16 %v201, %v200
    %v255 = vpack.c.b16 %v203, %v202
    %v256 = vpack.c.b16 %v205, %v204
    %v257 = vpack.c.b16 %v207, %v206
    %v258 = vpack.c.b16 %v209, %v208
    %v259 = vpack.c.b16 %v211, %v210
    %v260 = vpack.c.b16 %v213, %v212
    %v261 = vpack.c.b16 %v215, %v214
    %v262 = vpack.c.b16 %v217, %v216
    %v263 = vpack.c.b16 %v219, %v218
    %v264 = vpack.c.b16 %v221, %v220
    %v265 = vpack.c.b16 %v223, %v222
    %v266 = vpack.c.b16 %v225, %v224
    %v267 = vpack.c.b16 %v227, %v226
    %v268 = vpack.c.b16 %v229, %v228
    %v269 = vpack.c.b16 %v231, %v230
    %v270 = vpack.c.b16 %v233, %v232
    %v271 = vpack.c.b16 %v235, %v234
    %v272 = vpack.c.b16 %v237, %v236
    %v273 = vpack.c.b16 %v239, %v238
    %v274 = vpack.c.b16 %v241, %v240
    %v275 = vpack.c.b16 %v243, %v242
    %v324 = vunpack.c.l.b16 %v93
    %v325 = vunpack.c.l.b16 %v94
    %v326 = vunpack.c.l.b16 %v95
    %v327 = vunpack.c.l.b16 %v96
    %v328 = vunpack.c.l.b16 %v97
    %v329 = vunpack.c.l.b16 %v98
    %v330 = vunpack.c.l.b16 %v99
    %v331 = vunpack.c.l.b16 %v100
    %v332 = vunpack.c.l.b16 %v101
    %v333 = vunpack.c.l.b16 %v102
    %v334 = vunpack.c.l.b16 %v103
    %v335 = vunpack.c.l.b16 %v104
    %v336 = vunpack.c.l.b16 %v105
    %v337 = vunpack.c.l.b16 %v106
    %v338 = vunpack.c.l.b16 %v107
    %v339 = vunpack.c.l.b16 %v108
    %v340 = vpack.c.b16 %v325, %v324
    %v341 = vpack.c.b16 %v327, %v326
    %v342 = vpack.c.b16 %v329, %v328
    %v343 = vpack.c.b16 %v331, %v330
    %v344 = vpack.c.b16 %v333, %v332
    %v345 = vpack.c.b16 %v335, %v334
    %v346 = vpack.c.b16 %v337, %v336
    %v347 = vpack.c.b16 %v339, %v338
    %356 = vmatprep.subr.bf16.mxu0 0
    %357 = vmatpush1.bf16.msra.mxu0 %v340
    %358 = vmatprep.subr.bf16.mxu0 0
    %359 = vmatpush1.bf16.msra.mxu0 %v341
    %360 = vmatprep.subr.bf16.mxu0 0
    %361 = vmatpush1.bf16.msra.mxu0 %v342
    %362 = vmatprep.subr.bf16.mxu0 0
    %363 = vmatpush1.bf16.msra.mxu0 %v343
    %364 = vmatprep.subr.bf16.mxu0 0
    %365 = vmatpush1.bf16.msra.mxu0 %v344
    %366 = vmatprep.subr.bf16.mxu0 0
    %367 = vmatpush1.bf16.msra.mxu0 %v345
    %368 = vmatprep.subr.bf16.mxu0 0
    %369 = vmatpush1.bf16.msra.mxu0 %v346
    %370 = vmatprep.subr.bf16.mxu0 0
    %371 = vmatpush1.bf16.msra.mxu0 %v347
    %372 = vmatprep.subr.bf16.mxu0 0
    %373 = vmatpush1.bf16.msra.mxu0 0
    %374 = vmatprep.subr.bf16.mxu0 0
    %375 = vmatpush1.bf16.msra.mxu0 0
    %376 = vmatprep.subr.bf16.mxu0 0
    %377 = vmatpush1.bf16.msra.mxu0 0
    %378 = vmatprep.subr.bf16.mxu0 0
    %379 = vmatpush1.bf16.msra.mxu0 0
    %380 = vmatprep.subr.bf16.mxu0 0
    %381 = vmatpush1.bf16.msra.mxu0 0
    %382 = vmatprep.subr.bf16.mxu0 0
    %383 = vmatpush1.bf16.msra.mxu0 0
    %384 = vmatprep.subr.bf16.mxu0 0
    %385 = vmatpush1.bf16.msra.mxu0 0
    %386 = vmatprep.subr.bf16.mxu0 0
    %387 = vmatpush1.bf16.msra.mxu0 0
    %388 = vmatprep.mubr.bf16.mxu0 0
    %389 = vmatmul.mubr.bf16.gmra.mrb[0].mxu0 %v244
    %v390 = vpop.f32.mrb[0].mxu0
    %v391 = vadd.f32 %v114, %v390
    %v392 = vpop.f32.mrb[0].mxu0
    %v393 = vpop.f32.mrb[0].mxu0
    %v394 = vadd.f32 %v114, %v393
    %v395 = vpop.f32.mrb[0].mxu0
    %396 = vmatprep.mubr.bf16.mxu0 0
    %397 = vmatmul.mubr.bf16.gmra.mrb[0].mxu0 %v245
    %v398 = vpop.f32.mrb[0].mxu0
    %v399 = vadd.f32 %v114, %v398
    %v400 = vpop.f32.mrb[0].mxu0
    %v401 = vpop.f32.mrb[0].mxu0
    %v402 = vadd.f32 %v114, %v401
    %v403 = vpop.f32.mrb[0].mxu0
    %404 = vmatprep.mubr.bf16.mxu0 0
    %405 = vmatmul.mubr.bf16.gmra.mrb[0].mxu0 %v246
    %v406 = vpop.f32.mrb[0].mxu0
    %v407 = vadd.f32 %v114, %v406
    %v408 = vpop.f32.mrb[0].mxu0
    %v409 = vpop.f32.mrb[0].mxu0
    %v410 = vadd.f32 %v114, %v409
    %v411 = vpop.f32.mrb[0].mxu0
    %412 = vmatprep.mubr.bf16.mxu0 0
    %413 = vmatmul.mubr.bf16.gmra.mrb[0].mxu0 %v247
    %v414 = vpop.f32.mrb[0].mxu0
    %v415 = vadd.f32 %v114, %v414
    %v416 = vpop.f32.mrb[0].mxu0
    %v417 = vpop.f32.mrb[0].mxu0
    %v418 = vadd.f32 %v114, %v417
    %v419 = vpop.f32.mrb[0].mxu0
    %420 = vmatprep.mubr.bf16.mxu0 0
    %421 = vmatmul.mubr.bf16.gmra.mrb[0].mxu0 %v248
    %v422 = vpop.f32.mrb[0].mxu0
    %v423 = vadd.f32 %v114, %v422
    %v424 = vpop.f32.mrb[0].mxu0
    %v425 = vpop.f32.mrb[0].mxu0
    %v426 = vadd.f32 %v114, %v425
    %v427 = vpop.f32.mrb[0].mxu0
    %428 = vmatprep.mubr.bf16.mxu0 0
    %429 = vmatmul.mubr.bf16.gmra.mrb[0].mxu0 %v249
    %v430 = vpop.f32.mrb[0].mxu0
    %v431 = vadd.f32 %v114, %v430
    %v432 = vpop.f32.mrb[0].mxu0
    %v433 = vpop.f32.mrb[0].mxu0
    %v434 = vadd.f32 %v114, %v433
    %v435 = vpop.f32.mrb[0].mxu0
    %436 = vmatprep.mubr.bf16.mxu0 0
    %437 = vmatmul.mubr.bf16.gmra.mrb[0].mxu0 %v250
    %v438 = vpop.f32.mrb[0].mxu0
    %v439 = vadd.f32 %v114, %v438
    %v440 = vpop.f32.mrb[0].mxu0
    %v441 = vpop.f32.mrb[0].mxu0
    %v442 = vadd.f32 %v114, %v441
    %v443 = vpop.f32.mrb[0].mxu0
    %444 = vmatprep.mubr.bf16.mxu0 0
    %445 = vmatmul.mubr.bf16.gmra.mrb[0].mxu0 %v251
    %v446 = vpop.f32.mrb[0].mxu0
    %v447 = vadd.f32 %v114, %v446
    %v448 = vpop.f32.mrb[0].mxu0
    %v449 = vpop.f32.mrb[0].mxu0
    %v450 = vadd.f32 %v114, %v449
    %v451 = vpop.f32.mrb[0].mxu0
    %452 = vmatprep.mubr.bf16.mxu0 0
    %453 = vmatmul.mubr.bf16.gmra.mrb[0].mxu0 %v252
    %v454 = vpop.f32.mrb[0].mxu0
    %v455 = vadd.f32 %v114, %v454
    %v456 = vpop.f32.mrb[0].mxu0
    %v457 = vpop.f32.mrb[0].mxu0
    %v458 = vadd.f32 %v114, %v457
    %v459 = vpop.f32.mrb[0].mxu0
    %460 = vmatprep.mubr.bf16.mxu0 0
    %461 = vmatmul.mubr.bf16.gmra.mrb[0].mxu0 %v253
    %v462 = vpop.f32.mrb[0].mxu0
    %v463 = vadd.f32 %v114, %v462
    %v464 = vpop.f32.mrb[0].mxu0
    %v465 = vpop.f32.mrb[0].mxu0
    %v466 = vadd.f32 %v114, %v465
    %v467 = vpop.f32.mrb[0].mxu0
    %468 = vmatprep.mubr.bf16.mxu0 0
    %469 = vmatmul.mubr.bf16.gmra.mrb[0].mxu0 %v254
    %v470 = vpop.f32.mrb[0].mxu0
    %v471 = vadd.f32 %v114, %v470
    %v472 = vpop.f32.mrb[0].mxu0
    %v473 = vpop.f32.mrb[0].mxu0
    %v474 = vadd.f32 %v114, %v473
    %v475 = vpop.f32.mrb[0].mxu0
    %476 = vmatprep.mubr.bf16.mxu0 0
    %477 = vmatmul.mubr.bf16.gmra.mrb[0].mxu0 %v255
    %v478 = vpop.f32.mrb[0].mxu0
    %v479 = vadd.f32 %v114, %v478
    %v480 = vpop.f32.mrb[0].mxu0
    %v481 = vpop.f32.mrb[0].mxu0
    %v482 = vadd.f32 %v114, %v481
    %v483 = vpop.f32.mrb[0].mxu0
    %484 = vmatprep.mubr.bf16.mxu0 0
    %485 = vmatmul.mubr.bf16.gmra.mrb[0].mxu0 %v256
    %v486 = vpop.f32.mrb[0].mxu0
    %v487 = vadd.f32 %v114, %v486
    %v488 = vpop.f32.mrb[0].mxu0
    %v489 = vpop.f32.mrb[0].mxu0
    %v490 = vadd.f32 %v114, %v489
    %v491 = vpop.f32.mrb[0].mxu0
    %492 = vmatprep.mubr.bf16.mxu0 0
    %493 = vmatmul.mubr.bf16.gmra.mrb[0].mxu0 %v257
    %v494 = vpop.f32.mrb[0].mxu0
    %v495 = vadd.f32 %v114, %v494
    %v496 = vpop.f32.mrb[0].mxu0
    %v497 = vpop.f32.mrb[0].mxu0
    %v498 = vadd.f32 %v114, %v497
    %v499 = vpop.f32.mrb[0].mxu0
    %500 = vmatprep.mubr.bf16.mxu0 0
    %501 = vmatmul.mubr.bf16.gmra.mrb[0].mxu0 %v258
    %v502 = vpop.f32.mrb[0].mxu0
    %v503 = vadd.f32 %v114, %v502
    %v504 = vpop.f32.mrb[0].mxu0
    %v505 = vpop.f32.mrb[0].mxu0
    %v506 = vadd.f32 %v114, %v505
    %v507 = vpop.f32.mrb[0].mxu0
    %508 = vmatprep.mubr.bf16.mxu0 0
    %509 = vmatmul.mubr.bf16.gmra.mrb[0].mxu0 %v259
    %v510 = vpop.f32.mrb[0].mxu0
    %v511 = vadd.f32 %v114, %v510
    %v512 = vpop.f32.mrb[0].mxu0
    %v513 = vpop.f32.mrb[0].mxu0
    %v514 = vadd.f32 %v114, %v513
    %v515 = vpop.f32.mrb[0].mxu0
    %516 = vmatprep.mubr.bf16.mxu0 0
    %517 = vmatmul.mubr.bf16.gmra.mrb[0].mxu0 %v260
    %v518 = vpop.f32.mrb[0].mxu0
    %v519 = vadd.f32 %v114, %v518
    %v520 = vpop.f32.mrb[0].mxu0
    %v521 = vpop.f32.mrb[0].mxu0
    %v522 = vadd.f32 %v114, %v521
    %v523 = vpop.f32.mrb[0].mxu0
    %524 = vmatprep.mubr.bf16.mxu0 0
    %525 = vmatmul.mubr.bf16.gmra.mrb[0].mxu0 %v261
    %v526 = vpop.f32.mrb[0].mxu0
    %v527 = vadd.f32 %v114, %v526
    %v528 = vpop.f32.mrb[0].mxu0
    %v529 = vpop.f32.mrb[0].mxu0
    %v530 = vadd.f32 %v114, %v529
    %v531 = vpop.f32.mrb[0].mxu0
    %532 = vmatprep.mubr.bf16.mxu0 0
    %533 = vmatmul.mubr.bf16.gmra.mrb[0].mxu0 %v262
    %v534 = vpop.f32.mrb[0].mxu0
    %v535 = vadd.f32 %v114, %v534
    %v536 = vpop.f32.mrb[0].mxu0
    %v537 = vpop.f32.mrb[0].mxu0
    %v538 = vadd.f32 %v114, %v537
    %v539 = vpop.f32.mrb[0].mxu0
    %540 = vmatprep.mubr.bf16.mxu0 0
    %541 = vmatmul.mubr.bf16.gmra.mrb[0].mxu0 %v263
    %v542 = vpop.f32.mrb[0].mxu0
    %v543 = vadd.f32 %v114, %v542
    %v544 = vpop.f32.mrb[0].mxu0
    %v545 = vpop.f32.mrb[0].mxu0
    %v546 = vadd.f32 %v114, %v545
    %v547 = vpop.f32.mrb[0].mxu0
    %548 = vmatprep.mubr.bf16.mxu0 0
    %549 = vmatmul.mubr.bf16.gmra.mrb[0].mxu0 %v264
    %v550 = vpop.f32.mrb[0].mxu0
    %v551 = vadd.f32 %v114, %v550
    %v552 = vpop.f32.mrb[0].mxu0
    %v553 = vpop.f32.mrb[0].mxu0
    %v554 = vadd.f32 %v114, %v553
    %v555 = vpop.f32.mrb[0].mxu0
    %556 = vmatprep.mubr.bf16.mxu0 0
    %557 = vmatmul.mubr.bf16.gmra.mrb[0].mxu0 %v265
    %v558 = vpop.f32.mrb[0].mxu0
    %v559 = vadd.f32 %v114, %v558
    %v560 = vpop.f32.mrb[0].mxu0
    %v561 = vpop.f32.mrb[0].mxu0
    %v562 = vadd.f32 %v114, %v561
    %v563 = vpop.f32.mrb[0].mxu0
    %564 = vmatprep.mubr.bf16.mxu0 0
    %565 = vmatmul.mubr.bf16.gmra.mrb[0].mxu0 %v266
    %v566 = vpop.f32.mrb[0].mxu0
    %v567 = vadd.f32 %v114, %v566
    %v568 = vpop.f32.mrb[0].mxu0
    %v569 = vpop.f32.mrb[0].mxu0
    %v570 = vadd.f32 %v114, %v569
    %v571 = vpop.f32.mrb[0].mxu0
    %572 = vmatprep.mubr.bf16.mxu0 0
    %573 = vmatmul.mubr.bf16.gmra.mrb[0].mxu0 %v267
    %v574 = vpop.f32.mrb[0].mxu0
    %v575 = vadd.f32 %v114, %v574
    %v576 = vpop.f32.mrb[0].mxu0
    %v577 = vpop.f32.mrb[0].mxu0
    %v578 = vadd.f32 %v114, %v577
    %v579 = vpop.f32.mrb[0].mxu0
    %580 = vmatprep.mubr.bf16.mxu0 0
    %581 = vmatmul.mubr.bf16.gmra.mrb[0].mxu0 %v268
    %v582 = vpop.f32.mrb[0].mxu0
    %v583 = vadd.f32 %v114, %v582
    %v584 = vpop.f32.mrb[0].mxu0
    %v585 = vpop.f32.mrb[0].mxu0
    %v586 = vadd.f32 %v114, %v585
    %v587 = vpop.f32.mrb[0].mxu0
    %588 = vmatprep.mubr.bf16.mxu0 0
    %589 = vmatmul.mubr.bf16.gmra.mrb[0].mxu0 %v269
    %v590 = vpop.f32.mrb[0].mxu0
    %v591 = vadd.f32 %v114, %v590
    %v592 = vpop.f32.mrb[0].mxu0
    %v593 = vpop.f32.mrb[0].mxu0
    %v594 = vadd.f32 %v114, %v593
    %v595 = vpop.f32.mrb[0].mxu0
    %596 = vmatprep.mubr.bf16.mxu0 0
    %597 = vmatmul.mubr.bf16.gmra.mrb[0].mxu0 %v270
    %v598 = vpop.f32.mrb[0].mxu0
    %v599 = vadd.f32 %v114, %v598
    %v600 = vpop.f32.mrb[0].mxu0
    %v601 = vpop.f32.mrb[0].mxu0
    %v602 = vadd.f32 %v114, %v601
    %v603 = vpop.f32.mrb[0].mxu0
    %604 = vmatprep.mubr.bf16.mxu0 0
    %605 = vmatmul.mubr.bf16.gmra.mrb[0].mxu0 %v271
    %v606 = vpop.f32.mrb[0].mxu0
    %v607 = vadd.f32 %v114, %v606
    %v608 = vpop.f32.mrb[0].mxu0
    %v609 = vpop.f32.mrb[0].mxu0
    %v610 = vadd.f32 %v114, %v609
    %v611 = vpop.f32.mrb[0].mxu0
    %612 = vmatprep.mubr.bf16.mxu0 0
    %613 = vmatmul.mubr.bf16.gmra.mrb[0].mxu0 %v272
    %v614 = vpop.f32.mrb[0].mxu0
    %v615 = vadd.f32 %v114, %v614
    %v616 = vpop.f32.mrb[0].mxu0
    %v617 = vpop.f32.mrb[0].mxu0
    %v618 = vadd.f32 %v114, %v617
    %v619 = vpop.f32.mrb[0].mxu0
    %620 = vmatprep.mubr.bf16.mxu0 0
    %621 = vmatmul.mubr.bf16.gmra.mrb[0].mxu0 %v273
    %v622 = vpop.f32.mrb[0].mxu0
    %v623 = vadd.f32 %v114, %v622
    %v624 = vpop.f32.mrb[0].mxu0
    %v625 = vpop.f32.mrb[0].mxu0
    %v626 = vadd.f32 %v114, %v625
    %v627 = vpop.f32.mrb[0].mxu0
    %628 = vmatprep.mubr.bf16.mxu0 0
    %629 = vmatmul.mubr.bf16.gmra.mrb[0].mxu0 %v274
    %v630 = vpop.f32.mrb[0].mxu0
    %v631 = vadd.f32 %v114, %v630
    %v632 = vpop.f32.mrb[0].mxu0
    %v633 = vpop.f32.mrb[0].mxu0
    %v634 = vadd.f32 %v114, %v633
    %v635 = vpop.f32.mrb[0].mxu0
    %636 = vmatprep.mubr.bf16.mxu0 0
    %637 = vmatmul.mubr.bf16.gmra.mrb[0].mxu0 %v275
    %v638 = vpop.f32.mrb[0].mxu0
    %v639 = vadd.f32 %v114, %v638
    %v640 = vpop.f32.mrb[0].mxu0
    %v641 = vpop.f32.mrb[0].mxu0
    %v642 = vadd.f32 %v114, %v641
    %v643 = vpop.f32.mrb[0].mxu0
    %644 = vdwg.mxu0
    %v645 = vmax.f32 %v391, 0.0
    %v646 = vmax.f32 %v394, 0.0
    %v647 = vmax.f32 %v399, 0.0
    %v648 = vmax.f32 %v402, 0.0
    %v649 = vmax.f32 %v407, 0.0
    %v650 = vmax.f32 %v410, 0.0
    %v651 = vmax.f32 %v415, 0.0
    %v652 = vmax.f32 %v418, 0.0
    %v653 = vmax.f32 %v423, 0.0
    %v654 = vmax.f32 %v426, 0.0
    %v655 = vmax.f32 %v431, 0.0
    %v656 = vmax.f32 %v434, 0.0
    %v657 = vmax.f32 %v439, 0.0
    %v658 = vmax.f32 %v442, 0.0
    %v659 = vmax.f32 %v447, 0.0
    %v660 = vmax.f32 %v450, 0.0
    %v661 = vmax.f32 %v455, 0.0
    %v662 = vmax.f32 %v458, 0.0
    %v663 = vmax.f32 %v463, 0.0
    %v664 = vmax.f32 %v466, 0.0
    %v665 = vmax.f32 %v471, 0.0
    %v666 = vmax.f32 %v474, 0.0
    %v667 = vmax.f32 %v479, 0.0
    %v668 = vmax.f32 %v482, 0.0
    %v669 = vmax.f32 %v487, 0.0
    %v670 = vmax.f32 %v490, 0.0
    %v671 = vmax.f32 %v495, 0.0
    %v672 = vmax.f32 %v498, 0.0
    %v673 = vmax.f32 %v503, 0.0
    %v674 = vmax.f32 %v506, 0.0
    %v675 = vmax.f32 %v511, 0.0
    %v676 = vmax.f32 %v514, 0.0
    %v677 = vmax.f32 %v519, 0.0
    %v678 = vmax.f32 %v522, 0.0
    %v679 = vmax.f32 %v527, 0.0
    %v680 = vmax.f32 %v530, 0.0
    %v681 = vmax.f32 %v535, 0.0
    %v682 = vmax.f32 %v538, 0.0
    %v683 = vmax.f32 %v543, 0.0
    %v684 = vmax.f32 %v546, 0.0
    %v685 = vmax.f32 %v551, 0.0
    %v686 = vmax.f32 %v554, 0.0
    %v687 = vmax.f32 %v559, 0.0
    %v688 = vmax.f32 %v562, 0.0
    %v689 = vmax.f32 %v567, 0.0
    %v690 = vmax.f32 %v570, 0.0
    %v691 = vmax.f32 %v575, 0.0
    %v692 = vmax.f32 %v578, 0.0
    %v693 = vmax.f32 %v583, 0.0
    %v694 = vmax.f32 %v586, 0.0
    %v695 = vmax.f32 %v591, 0.0
    %v696 = vmax.f32 %v594, 0.0
    %v697 = vmax.f32 %v599, 0.0
    %v698 = vmax.f32 %v602, 0.0
    %v699 = vmax.f32 %v607, 0.0
    %v700 = vmax.f32 %v610, 0.0
    %v701 = vmax.f32 %v615, 0.0
    %v702 = vmax.f32 %v618, 0.0
    %v703 = vmax.f32 %v623, 0.0
    %v704 = vmax.f32 %v626, 0.0
    %v705 = vmax.f32 %v631, 0.0
    %v706 = vmax.f32 %v634, 0.0
    %v707 = vmax.f32 %v639, 0.0
    %v708 = vmax.f32 %v642, 0.0
    %vm709 = vcmask 261120
    %710 = vst.msk [vmem:[%s3] sm:$0xff] %vm709, %v645
    %711 = vst.msk [vmem:[%s3 + $0x8] sm:$0xff] %vm709, %v646
    %712 = vst.msk [vmem:[%s3 + $0x10] sm:$0xff] %vm709, %v647
    %713 = vst.msk [vmem:[%s3 + $0x18] sm:$0xff] %vm709, %v648
    %714 = vst.msk [vmem:[%s3 + $0x20] sm:$0xff] %vm709, %v649
    %715 = vst.msk [vmem:[%s3 + $0x28] sm:$0xff] %vm709, %v650
    %716 = vst.msk [vmem:[%s3 + $0x30] sm:$0xff] %vm709, %v651
    %717 = vst.msk [vmem:[%s3 + $0x38] sm:$0xff] %vm709, %v652
    %718 = vst.msk [vmem:[%s3 + $0x40] sm:$0xff] %vm709, %v653
    %719 = vst.msk [vmem:[%s3 + $0x48] sm:$0xff] %vm709, %v654
    %720 = vst.msk [vmem:[%s3 + $0x50] sm:$0xff] %vm709, %v655
    %721 = vst.msk [vmem:[%s3 + $0x58] sm:$0xff] %vm709, %v656
    %722 = vst.msk [vmem:[%s3 + $0x60] sm:$0xff] %vm709, %v657
    %723 = vst.msk [vmem:[%s3 + $0x68] sm:$0xff] %vm709, %v658
    %724 = vst.msk [vmem:[%s3 + $0x70] sm:$0xff] %vm709, %v659
    %725 = vst.msk [vmem:[%s3 + $0x78] sm:$0xff] %vm709, %v660
    %726 = vst.msk [vmem:[%s3 + $0x80] sm:$0xff] %vm709, %v661
    %727 = vst.msk [vmem:[%s3 + $0x88] sm:$0xff] %vm709, %v662
    %728 = vst.msk [vmem:[%s3 + $0x90] sm:$0xff] %vm709, %v663
    %729 = vst.msk [vmem:[%s3 + $0x98] sm:$0xff] %vm709, %v664
    %730 = vst.msk [vmem:[%s3 + $0xa0] sm:$0xff] %vm709, %v665
    %731 = vst.msk [vmem:[%s3 + $0xa8] sm:$0xff] %vm709, %v666
    %732 = vst.msk [vmem:[%s3 + $0xb0] sm:$0xff] %vm709, %v667
    %733 = vst.msk [vmem:[%s3 + $0xb8] sm:$0xff] %vm709, %v668
    %734 = vst.msk [vmem:[%s3 + $0xc0] sm:$0xff] %vm709, %v669
    %735 = vst.msk [vmem:[%s3 + $0xc8] sm:$0xff] %vm709, %v670
    %736 = vst.msk [vmem:[%s3 + $0xd0] sm:$0xff] %vm709, %v671
    %737 = vst.msk [vmem:[%s3 + $0xd8] sm:$0xff] %vm709, %v672
    %738 = vst.msk [vmem:[%s3 + $0xe0] sm:$0xff] %vm709, %v673
    %739 = vst.msk [vmem:[%s3 + $0xe8] sm:$0xff] %vm709, %v674
    %740 = vst.msk [vmem:[%s3 + $0xf0] sm:$0xff] %vm709, %v675
    %741 = vst.msk [vmem:[%s3 + $0xf8] sm:$0xff] %vm709, %v676
    %742 = vst.msk [vmem:[%s3 + $0x100] sm:$0xff] %vm709, %v677
    %743 = vst.msk [vmem:[%s3 + $0x108] sm:$0xff] %vm709, %v678
    %744 = vst.msk [vmem:[%s3 + $0x110] sm:$0xff] %vm709, %v679
    %745 = vst.msk [vmem:[%s3 + $0x118] sm:$0xff] %vm709, %v680
    %746 = vst.msk [vmem:[%s3 + $0x120] sm:$0xff] %vm709, %v681
    %747 = vst.msk [vmem:[%s3 + $0x128] sm:$0xff] %vm709, %v682
    %748 = vst.msk [vmem:[%s3 + $0x130] sm:$0xff] %vm709, %v683
    %749 = vst.msk [vmem:[%s3 + $0x138] sm:$0xff] %vm709, %v684
    %750 = vst.msk [vmem:[%s3 + $0x140] sm:$0xff] %vm709, %v685
    %751 = vst.msk [vmem:[%s3 + $0x148] sm:$0xff] %vm709, %v686
    %752 = vst.msk [vmem:[%s3 + $0x150] sm:$0xff] %vm709, %v687
    %753 = vst.msk [vmem:[%s3 + $0x158] sm:$0xff] %vm709, %v688
    %754 = vst.msk [vmem:[%s3 + $0x160] sm:$0xff] %vm709, %v689
    %755 = vst.msk [vmem:[%s3 + $0x168] sm:$0xff] %vm709, %v690
    %756 = vst.msk [vmem:[%s3 + $0x170] sm:$0xff] %vm709, %v691
    %757 = vst.msk [vmem:[%s3 + $0x178] sm:$0xff] %vm709, %v692
    %758 = vst.msk [vmem:[%s3 + $0x180] sm:$0xff] %vm709, %v693
    %759 = vst.msk [vmem:[%s3 + $0x188] sm:$0xff] %vm709, %v694
    %760 = vst.msk [vmem:[%s3 + $0x190] sm:$0xff] %vm709, %v695
    %761 = vst.msk [vmem:[%s3 + $0x198] sm:$0xff] %vm709, %v696
    %762 = vst.msk [vmem:[%s3 + $0x1a0] sm:$0xff] %vm709, %v697
    %763 = vst.msk [vmem:[%s3 + $0x1a8] sm:$0xff] %vm709, %v698
    %764 = vst.msk [vmem:[%s3 + $0x1b0] sm:$0xff] %vm709, %v699
    %765 = vst.msk [vmem:[%s3 + $0x1b8] sm:$0xff] %vm709, %v700
    %766 = vst.msk [vmem:[%s3 + $0x1c0] sm:$0xff] %vm709, %v701
    %767 = vst.msk [vmem:[%s3 + $0x1c8] sm:$0xff] %vm709, %v702
    %768 = vst.msk [vmem:[%s3 + $0x1d0] sm:$0xff] %vm709, %v703
    %769 = vst.msk [vmem:[%s3 + $0x1d8] sm:$0xff] %vm709, %v704
    %770 = vst.msk [vmem:[%s3 + $0x1e0] sm:$0xff] %vm709, %v705
    %771 = vst.msk [vmem:[%s3 + $0x1e8] sm:$0xff] %vm709, %v706
    %772 = vst.msk [vmem:[%s3 + $0x1f0] sm:$0xff] %vm709, %v707
    %773 = vst.msk [vmem:[%s3 + $0x1f8] sm:$0xff] %vm709, %v708
    // Predicated region
    $region18: #{tpu_custom_call.1} parent=1 // pred_check
      _
    $region19: #{tpu_custom_call.1} parent=1 // pred_check_branch
      %775 = sbr.rel (0) target = $region21
    $region20: #{tpu_custom_call.1} parent=1 // pred_region
      _
    $region21: #{tpu_custom_call.1} parent=1 // pred_fallthru
      _
    // Predicated region
    $region22: #{tpu_custom_call.1} parent=1 // pred_check
      _
    $region23: #{tpu_custom_call.1} parent=1 // pred_check_branch
      %777 = sbr.rel (0) target = $region25
    $region24: #{tpu_custom_call.1} parent=1 // pred_region
      _
    $region25: #{tpu_custom_call.1} parent=1 // pred_fallthru
      _
    %778 = vsyncpa [#allocation3], 1

</llo_original>
